<compile_context>
chip_gen: v7x
topology: tpu7x:2x2x1
jax: 0.10.0
libtpu: 0.0.40
codegen_flags: <defaults>
</compile_context>

<pallas_src>
import functools

import numpy as np
import jax
import jax.numpy as jnp
from jax import lax
from jax.experimental import pallas as pl
from jax.experimental.pallas import tpu as pltpu

# ---- static hyperparameters (module defaults) -------------------------------
MAX_ACTION = 1.0
SIGMA_MIN = 1e-8
SIGMA_MAX = 1.0
LOG_SIG_MIN = float(np.log(SIGMA_MIN))
LOG_SIG_MAX = float(np.log(SIGMA_MAX))


def _round_up(x: int, m: int) -> int:
    return ((x + m - 1) // m) * m


def _cdiv(a: int, b: int) -> int:
    return -(-a // b)


def _vmem_capacity_bytes() -> int:
    """Physical per-core VMEM (generation aware); conservative fallback (v7x)."""
    try:
        info = pltpu.get_tpu_info()
        for attr in ("vmem_capacity_bytes", "vmem_bytes", "vmem_size_bytes"):
            v = getattr(info, attr, None)
            if isinstance(v, (int, np.integer)) and v > 0:
                return int(v)
    except Exception:
        pass
    return 64 << 20          # assume the smallest per-TensorCore VMEM (v7x)


# ---- Pallas kernel: fused preprocess + mu MLP + tanh ------------------------
def _mu_kernel(obs_ref, wp_ref, bp_ref, w1_ref, b1_ref, w2r_ref, b2_ref, mu_ref,
               *, n_rows, tile_rows, mask_tail, compute_dtype):
    x = obs_ref[...]                                   # (TM, F) native f32 rows

    if mask_tail:
        # Ragged last tile: rows >= n_rows hold stale VMEM; zero them before
        # any matmul so only finite values flow through ReLU/tanh.
        row = (pl.program_id(0) * tile_rows
               + lax.broadcasted_iota(jnp.int32, (tile_rows, 1), 0))
        x = jnp.where(row < n_rows, x, 0.0)

    xc = x.astype(compute_dtype)                       # cast on-chip (VPU slack)

    # preprocess: Linear(F->D) + ReLU  (f32 accumulation, f32 elementwise)
    h = jnp.dot(xc, wp_ref[...], preferred_element_type=jnp.float32) + bp_ref[...]
    h = jnp.maximum(h, 0.0)                            # (TM, Dp) f32

    # mu MLP layer 1: Linear(D->H) + ReLU
    h1 = jnp.dot(h.astype(compute_dtype), w1_ref[...],
                 preferred_element_type=jnp.float32) + b1_ref[...]
    h1 = jnp.maximum(h1, 0.0)                          # (TM, Hp) f32

    # mu MLP layer 2: Linear(H->1) as a flash-attention-style NT contraction
    # (lhs = tiny (8, Hp) weight row block, rhs contracted on its last dim),
    # producing a lane-dense (8, TM) result on the MXU.
    mu8 = lax.dot_general(
        w2r_ref[...], h1.astype(compute_dtype),
        dimension_numbers=(((1,), (1,)), ((), ())),
        preferred_element_type=jnp.float32)            # (8, TM); rows 1..7 exact 0
    mu = mu8[0:1, :] + b2_ref[0]                       # (1, TM) f32, b2 from SMEM

    # bounded action (unbounded=False): mu = max_action * tanh(mu)
    mu_ref[...] = MAX_ACTION * jnp.tanh(mu)


# ---- wrapper ----------------------------------------------------------------
def meta_actor_prob_forward(obs, params, *, compute_dtype=jnp.bfloat16):
    """obs: (B, CH, F).  Returns (mu, sigma), each (B, CH) float32."""
    B, CH, F = obs.shape
    N = B * CH
    f32 = jnp.float32
    cbytes = int(np.dtype(compute_dtype).itemsize)

    wp = params["wp"].astype(compute_dtype)            # (F, D)
    bp = params["bp"].reshape(1, -1).astype(f32)       # (1, D)
    w1 = params["w1"].astype(compute_dtype)            # (D, H)
    b1 = params["b1"].reshape(1, -1).astype(f32)       # (1, H)
    w2 = params["w2"]                                  # (H, 1)
    b2 = params["b2"].reshape(1).astype(f32)           # (1,)  -> SMEM scalar
    D, H = wp.shape[1], w1.shape[1]

    # Zero-pad hidden dims to full 128-lane width (exact: ReLU(0)=0, 0-products).
    Dp, Hp = _round_up(D, 128), _round_up(H, 128)
    wp = jnp.pad(wp, ((0, 0), (0, Dp - D)))
    bp = jnp.pad(bp, ((0, 0), (0, Dp - D)))
    w1 = jnp.pad(w1, ((0, Dp - D), (0, Hp - H)))
    b1 = jnp.pad(b1, ((0, 0), (0, Hp - H)))
    # w2 transposed to a row, padded to 8 sublanes (rows 1..7 zero) + Hp lanes.
    w2r = jnp.pad(w2.reshape(1, H).astype(compute_dtype), ((0, 7), (0, Hp - H)))

    # ---- generation-aware row tile ------------------------------------------
    vmem_cap = _vmem_capacity_bytes()
    vmem_limit = (64 << 20) if vmem_cap >= (100 << 20) else (32 << 20)
    LANES = 128
    per_row = (_round_up(F, LANES) * 4 * 2    # obs block: f32, double-buffered,
               #                                lane-padded VMEM layout
               + _round_up(F, LANES) * cbytes  # in-kernel compute-dtype cast
               + Dp * (4 + cbytes)             # h  (f32) + its compute cast
               + Hp * (4 + cbytes)             # h1 (f32) + its compute cast
               + 48)                           # mu8/mu rows + (1,TM) out (dbuf)
    budget = vmem_limit // 2 - (1 << 20)       # headroom for weights/compiler
    TM = max(128, min(8192, (budget // per_row) // 128 * 128))
    # Megacore: keep at least 2 grid steps so v7x's second TensorCore works.
    TM = min(TM, max(128, _round_up(_cdiv(N, 2), 128)))
    G = _cdiv(N, TM)
    if G > 2 and G % 2 == 1:                   # prefer an even step count
        TM2 = _round_up(_cdiv(N, G + 1), 128)
        if 128 <= TM2 <= TM:
            TM, G = TM2, _cdiv(N, TM2)

    # No wrapper-side cast or pad of obs: the kernel reads native f32 rows and
    # zero-masks the ragged tail itself (avoids 1-2 extra HBM passes over obs).
    obs2d = obs.reshape(N, F)
    mask_tail = (N % TM) != 0

    kernel = functools.partial(_mu_kernel, n_rows=N, tile_rows=TM,
                               mask_tail=mask_tail, compute_dtype=compute_dtype)

    def const(shape):
        # Constant block index => Pallas DMAs these weights/biases only once.
        return pl.BlockSpec(shape, lambda i: (0,) * len(shape))

    flops = 2 * N * (F * Dp + Dp * Hp + 8 * Hp)
    bytes_accessed = int(N * F * 4
                         + (F * Dp + Dp * Hp + 8 * Hp) * cbytes
                         + (Dp + Hp + 1) * 4
                         + G * TM * 4)

    mu_row = pl.pallas_call(
        kernel,
        grid=(G,),
        in_specs=[
            pl.BlockSpec((TM, F), lambda i: (i, 0)),    # obs rows (pipelined)
            const((F, Dp)),                             # VMEM-resident weights
            const((1, Dp)),
            const((Dp, Hp)),
            const((1, Hp)),
            const((8, Hp)),
            pl.BlockSpec(memory_space=pltpu.MemorySpace.SMEM),   # b2 scalar
        ],
        out_specs=pl.BlockSpec((1, TM), lambda i: (0, i)),   # lane-dense mu row
        out_shape=jax.ShapeDtypeStruct((1, G * TM), jnp.float32),
        compiler_params=pltpu.CompilerParams(
            dimension_semantics=("parallel",),          # megacore split on v7x
            vmem_limit_bytes=vmem_limit,
        ),
        cost_estimate=pl.CostEstimate(
            flops=flops, transcendentals=N, bytes_accessed=bytes_accessed),
    )(obs2d, wp, bp, w1, b1, w2r, b2)

    mu = mu_row.reshape(G * TM)[:N].reshape(B, CH)

    # sigma is obs-independent (conditioned_sigma=False): compute in the wrapper
    # instead of wasting a (B, CH<128) masked-store output in the kernel.
    sp = params["sigma_param"].reshape(1, CH).astype(f32)
    sigma = jnp.broadcast_to(
        jnp.exp(jnp.clip(sp, LOG_SIG_MIN, LOG_SIG_MAX)), (B, CH))
    return mu, sigma


# ---- pure-JAX reference (mirrors the PyTorch forward) -----------------------
def meta_actor_prob_reference(obs, params):
    B, CH, F = obs.shape
    x = obs.reshape(B * CH, F)
    h = jnp.maximum(x @ params["wp"] + params["bp"], 0.0)
    h1 = jnp.maximum(h @ params["w1"] + params["b1"], 0.0)
    mu = (h1 @ params["w2"] + params["b2"]).reshape(B, CH)
    mu = MAX_ACTION * jnp.tanh(mu)
    sp = params["sigma_param"].reshape(1, CH)
    sigma = jnp.exp(jnp.clip(sp + jnp.zeros_like(mu), LOG_SIG_MIN, LOG_SIG_MAX))
    return mu, sigma


def _make_params(key, F, D, H, CH):
    ks = jax.random.split(key, 6)
    return {
        "wp": jax.random.normal(ks[0], (F, D), jnp.float32) * 0.1,
        "bp": jax.random.normal(ks[1], (1, D), jnp.float32) * 0.1,
        "w1": jax.random.normal(ks[2], (D, H), jnp.float32) * 0.1,
        "b1": jax.random.normal(ks[3], (1, H), jnp.float32) * 0.1,
        "w2": jax.random.normal(ks[4], (H, 1), jnp.float32) * 0.1,
        "b2": jax.random.normal(ks[5], (1, 1), jnp.float32) * 0.1,
        # nn.Parameter(torch.zeros(output_dim, 1)) -> zeros, shape (CH, 1)
        "sigma_param": jnp.zeros((CH, 1), jnp.float32),
    }


if __name__ == "__main__":
    key = jax.random.PRNGKey(0)
    k_param, k_obs, k_param2, k_obs2 = jax.random.split(key, 4)

    # ---- small shapes consistent with the module's forward ------------------
    B, CH, F = 2, 4, 16          # batch, action channels (action_shape[0]), feat
    D, H = 32, 32                # preprocess output dim, mu-MLP hidden size
    params = _make_params(k_param, F, D, H, CH)
    obs = jax.random.normal(k_obs, (B, CH, F), jnp.float32)

    mu_ref, sigma_ref = meta_actor_prob_reference(obs, params)

    # float32 compute path: tight check against the reference.
    fwd_f32 = jax.jit(functools.partial(meta_actor_prob_forward,
                                        compute_dtype=jnp.float32))
    mu32, sig32 = jax.block_until_ready(fwd_f32(obs, params))
    assert mu32.shape == (B, CH) and sig32.shape == (B, CH)
    np.testing.assert_allclose(np.asarray(mu32), np.asarray(mu_ref),
                               rtol=1e-4, atol=1e-4)
    np.testing.assert_allclose(np.asarray(sig32), np.asarray(sigma_ref),
                               rtol=1e-5, atol=1e-5)

    # recommended bf16-matmul path (f32 accumulation + f32 elementwise).
    fwd_bf16 = jax.jit(functools.partial(meta_actor_prob_forward,
                                         compute_dtype=jnp.bfloat16))
    mu16, sig16 = jax.block_until_ready(fwd_bf16(obs, params))
    np.testing.assert_allclose(np.asarray(mu16), np.asarray(mu_ref),
                               rtol=2e-2, atol=2e-2)
    np.testing.assert_allclose(np.asarray(sig16), np.asarray(sigma_ref),
                               rtol=1e-5, atol=1e-5)

    # ---- multi-tile + ragged-tail sanity (exercises in-kernel masking) ------
    B2, CH2 = 33, 9              # N = 297: two tiles, ragged last tile
    params2 = _make_params(k_param2, F, D, H, CH2)
    obs2 = jax.random.normal(k_obs2, (B2, CH2, F), jnp.float32)
    mu_ref2, sigma_ref2 = meta_actor_prob_reference(obs2, params2)
    mu2, sig2 = jax.block_until_ready(fwd_f32(obs2, params2))
    np.testing.assert_allclose(np.asarray(mu2), np.asarray(mu_ref2),
                               rtol=1e-4, atol=1e-4)
    np.testing.assert_allclose(np.asarray(sig2), np.asarray(sigma_ref2),
                               rtol=1e-5, atol=1e-5)

    print("KERNEL_OK")
</pallas_src>

<mosaic_0001>
module attributes {stable_mosaic.version = 11 : i64} {
  func.func @_mu_kernel(%arg0: i32, %arg1: memref<128x16xf32, #tpu.memory_space<vmem>>, %arg2: memref<16x128xf32, #tpu.memory_space<vmem>>, %arg3: memref<1x128xf32, #tpu.memory_space<vmem>>, %arg4: memref<128x128xf32, #tpu.memory_space<vmem>>, %arg5: memref<1x128xf32, #tpu.memory_space<vmem>>, %arg6: memref<8x128xf32, #tpu.memory_space<vmem>>, %arg7: memref<1xf32, #tpu.memory_space<smem>>, %arg8: memref<1x128xf32, #tpu.memory_space<vmem>>) attributes {dimension_semantics = [#tpu.dimension_semantics<parallel>], iteration_bounds = array<i64: 1>, scalar_prefetch = 0 : i64, scratch_operands = 0 : i64, tpu.core_type = #tpu.core_type<tc>, window_params = [{transform_indices = @transform_0, window_bounds = array<i64: 128, 16>}, {pipeline_mode = #tpu.pipeline_mode<synchronous>, transform_indices = @transform_1, window_bounds = array<i64: 16, 128>}, {pipeline_mode = #tpu.pipeline_mode<synchronous>, transform_indices = @transform_2, window_bounds = array<i64: 1, 128>}, {pipeline_mode = #tpu.pipeline_mode<synchronous>, transform_indices = @transform_3, window_bounds = array<i64: 128, 128>}, {pipeline_mode = #tpu.pipeline_mode<synchronous>, transform_indices = @transform_4, window_bounds = array<i64: 1, 128>}, {pipeline_mode = #tpu.pipeline_mode<synchronous>, transform_indices = @transform_5, window_bounds = array<i64: 8, 128>}, {transform_indices = @transform_6, window_bounds = array<i64: 1>}, {transform_indices = @transform_7, window_bounds = array<i64: 1, 128>}]} {
    %c0 = arith.constant 0 : index
    %c0_0 = arith.constant 0 : index
    %0 = vector.load %arg1[%c0, %c0_0] : memref<128x16xf32, #tpu.memory_space<vmem>>, vector<128x16xf32>
    %c128_i32 = arith.constant 128 : i32
    %1 = arith.muli %arg0, %c128_i32 : i32
    %2 = tpu.iota {dimensions = array<i32: 0>} : vector<128x1xi32>
    %3 = vector.broadcast %1 : i32 to vector<128x1xi32>
    %4 = arith.addi %3, %2 : vector<128x1xi32>
    %c8_i32 = arith.constant 8 : i32
    %5 = vector.broadcast %c8_i32 : i32 to vector<128x1xi32>
    %6 = arith.cmpi slt, %4, %5 : vector<128x1xi32>
    %cst = arith.constant 0.000000e+00 : f32
    %7 = vector.shape_cast %6 : vector<128x1xi1> to vector<128x1xi1>
    %8 = vector.broadcast %7 : vector<128x1xi1> to vector<128x16xi1>
    %9 = vector.broadcast %cst : f32 to vector<128x16xf32>
    %10 = arith.select %8, %0, %9 : vector<128x16xi1>, vector<128x16xf32>
    %c0_1 = arith.constant 0 : index
    %c0_2 = arith.constant 0 : index
    %11 = vector.load %arg2[%c0_1, %c0_2] : memref<16x128xf32, #tpu.memory_space<vmem>>, vector<16x128xf32>
    %cst_3 = arith.constant dense<0.000000e+00> : vector<128x128xf32>
    %12 = tpu.matmul %10, %11, %cst_3 {dimension_numbers = #tpu.dot_dimension_numbers<[1], [0], [0], [1], [0, 0, 1, 1], [], []>} : vector<128x16xf32>, vector<16x128xf32>, vector<128x128xf32> -> vector<128x128xf32>
    %c0_4 = arith.constant 0 : index
    %c0_5 = arith.constant 0 : index
    %13 = vector.load %arg3[%c0_4, %c0_5] : memref<1x128xf32, #tpu.memory_space<vmem>>, vector<1x128xf32>
    %14 = vector.broadcast %13 : vector<1x128xf32> to vector<128x128xf32>
    %15 = arith.addf %12, %14 : vector<128x128xf32>
    %cst_6 = arith.constant 0.000000e+00 : f32
    %16 = vector.broadcast %cst_6 : f32 to vector<128x128xf32>
    %17 = arith.maximumf %15, %16 : vector<128x128xf32>
    %c0_7 = arith.constant 0 : index
    %c0_8 = arith.constant 0 : index
    %18 = vector.load %arg4[%c0_7, %c0_8] : memref<128x128xf32, #tpu.memory_space<vmem>>, vector<128x128xf32>
    %cst_9 = arith.constant dense<0.000000e+00> : vector<128x128xf32>
    %19 = tpu.matmul %17, %18, %cst_9 {dimension_numbers = #tpu.dot_dimension_numbers<[1], [0], [0], [1], [0, 0, 1, 1], [], []>} : vector<128x128xf32>, vector<128x128xf32>, vector<128x128xf32> -> vector<128x128xf32>
    %c0_10 = arith.constant 0 : index
    %c0_11 = arith.constant 0 : index
    %20 = vector.load %arg5[%c0_10, %c0_11] : memref<1x128xf32, #tpu.memory_space<vmem>>, vector<1x128xf32>
    %21 = vector.broadcast %20 : vector<1x128xf32> to vector<128x128xf32>
    %22 = arith.addf %19, %21 : vector<128x128xf32>
    %cst_12 = arith.constant 0.000000e+00 : f32
    %23 = vector.broadcast %cst_12 : f32 to vector<128x128xf32>
    %24 = arith.maximumf %22, %23 : vector<128x128xf32>
    %c0_13 = arith.constant 0 : index
    %c0_14 = arith.constant 0 : index
    %25 = vector.load %arg6[%c0_13, %c0_14] : memref<8x128xf32, #tpu.memory_space<vmem>>, vector<8x128xf32>
    %cst_15 = arith.constant dense<0.000000e+00> : vector<8x128xf32>
    %26 = tpu.matmul %25, %24, %cst_15 {dimension_numbers = #tpu.dot_dimension_numbers<[1], [1], [0], [0], [0, 0, 1, 0], [], []>} : vector<8x128xf32>, vector<128x128xf32>, vector<8x128xf32> -> vector<8x128xf32>
    %27 = vector.extract_strided_slice %26 {offsets = [0, 0], sizes = [1, 128], strides = [1, 1]} : vector<8x128xf32> to vector<1x128xf32>
    %c0_16 = arith.constant 0 : index
    %28 = memref.load %arg7[%c0_16] : memref<1xf32, #tpu.memory_space<smem>>
    %29 = vector.broadcast %28 : f32 to vector<1x128xf32>
    %30 = arith.addf %27, %29 : vector<1x128xf32>
    %31 = math.tanh %30 : vector<1x128xf32>
    %cst_17 = arith.constant 1.000000e+00 : f32
    %32 = vector.broadcast %cst_17 : f32 to vector<1x128xf32>
    %33 = arith.mulf %32, %31 : vector<1x128xf32>
    %c0_18 = arith.constant 0 : index
    %c0_19 = arith.constant 0 : index
    %34 = vector.load %arg8[%c0_18, %c0_19] : memref<1x128xf32, #tpu.memory_space<vmem>>, vector<1x128xf32>
    tpu.vector_store %arg8[%c0_18, %c0_19], %33 {strides = array<i32>} : memref<1x128xf32, #tpu.memory_space<vmem>>, vector<1x128xf32>,
    return
  }
  func.func @transform_0(%arg0: i32) -> (i32, i32) {
    %c0_i32 = arith.constant 0 : i32
    %c0_i32_0 = arith.constant 0 : i32
    return %arg0, %c0_i32 : i32, i32
  }
  func.func @transform_1(%arg0: i32) -> (i32, i32) {
    %c0_i32 = arith.constant 0 : i32
    %c0_i32_0 = arith.constant 0 : i32
    %c0_i32_1 = arith.constant 0 : i32
    return %c0_i32, %c0_i32_0 : i32, i32
  }
  func.func @transform_2(%arg0: i32) -> (i32, i32) {
    %c0_i32 = arith.constant 0 : i32
    %c0_i32_0 = arith.constant 0 : i32
    %c0_i32_1 = arith.constant 0 : i32
    return %c0_i32, %c0_i32_0 : i32, i32
  }
  func.func @transform_3(%arg0: i32) -> (i32, i32) {
    %c0_i32 = arith.constant 0 : i32
    %c0_i32_0 = arith.constant 0 : i32
    %c0_i32_1 = arith.constant 0 : i32
    return %c0_i32, %c0_i32_0 : i32, i32
  }
  func.func @transform_4(%arg0: i32) -> (i32, i32) {
    %c0_i32 = arith.constant 0 : i32
    %c0_i32_0 = arith.constant 0 : i32
    %c0_i32_1 = arith.constant 0 : i32
    return %c0_i32, %c0_i32_0 : i32, i32
  }
  func.func @transform_5(%arg0: i32) -> (i32, i32) {
    %c0_i32 = arith.constant 0 : i32
    %c0_i32_0 = arith.constant 0 : i32
    %c0_i32_1 = arith.constant 0 : i32
    return %c0_i32, %c0_i32_0 : i32, i32
  }
  func.func @transform_6(%arg0: i32) -> i32 {
    %c0_i32 = arith.constant 0 : i32
    %c0_i32_0 = arith.constant 0 : i32
    return %c0_i32 : i32
  }
  func.func @transform_7(%arg0: i32) -> (i32, i32) {
    %c0_i32 = arith.constant 0 : i32
    %c0_i32_0 = arith.constant 0 : i32
    return %c0_i32, %arg0 : i32, i32
  }
}

</mosaic_0001>

<llo_original>
// kernel: meta_actor_prob_forward.1
$region0: #{meta_actor_prob_forward.1}
  #allocation0 [shape = 'u32[]', space=smem, size = 0x4, offset = 0x4, fixed_abs, tag = 'smem constant byte address 0x4 - core index']
  #allocation1 [shape = 'u32[144,128]{1,0:T(1,128)}', space=vmem, size = 0x12000, scoped, tag = 'internal scratch']
  #allocation2 [shape = 'f32[1]{0:T(128)S(6)}', space=smem, size = 0x200, scoped, tag = 'scoped memory for meta_actor_prob_forward.1']
  %s0 = inlined_call_operand.vmem [shape: f32[8,16], index: 0, kind: input, shape index: {}]
  %s1 = inlined_call_operand.vmem [shape: f32[16,128], index: 1, kind: input, shape index: {}]
  %s2 = inlined_call_operand.vmem [shape: f32[1,128], index: 2, kind: input, shape index: {}]
  %s3 = inlined_call_operand.vmem [shape: f32[128,128], index: 3, kind: input, shape index: {}]
  %s4 = inlined_call_operand.vmem [shape: f32[1,128], index: 4, kind: input, shape index: {}]
  %s5 = inlined_call_operand.vmem [shape: f32[8,128], index: 5, kind: input, shape index: {}]
  %s6 = inlined_call_operand.<no memory space> [shape: f32[1], index: 6, kind: input, shape index: {}]
  %s7 = inlined_call_operand.vmem [shape: f32[1,128], index: 7, kind: output, shape index: {}]
  %s8 = sld [smem:[#allocation0]]
  $region38: #{meta_actor_prob_forward.1} parent=0
    _
  %s10 = ssub.s32 1, %s8
  %s11 = scalar_select 0, %s10, %s8
  %12 = sst [smem:[#allocation2]] %s6
  // Predicated region
  $region2: #{meta_actor_prob_forward.1} parent=0 // pred_check
    _
  $region3: #{meta_actor_prob_forward.1} parent=0 // pred_check_branch
    %14 = sbr.rel (0) target = $region5
  $region4: #{meta_actor_prob_forward.1} parent=0 // pred_region
    _
  $region5: #{meta_actor_prob_forward.1} parent=0 // pred_fallthru
    _
  // Predicated region
  $region6: #{meta_actor_prob_forward.1} parent=0 // pred_check
    _
  $region7: #{meta_actor_prob_forward.1} parent=0 // pred_check_branch
    %16 = sbr.rel (0) target = $region9
  $region8: #{meta_actor_prob_forward.1} parent=0 // pred_region
    _
  $region9: #{meta_actor_prob_forward.1} parent=0 // pred_fallthru
    _
  // Predicated region
  $region10: #{meta_actor_prob_forward.1} parent=0 // pred_check
    _
  $region11: #{meta_actor_prob_forward.1} parent=0 // pred_check_branch
    %18 = sbr.rel (0) target = $region13
  $region12: #{meta_actor_prob_forward.1} parent=0 // pred_region
    _
  $region13: #{meta_actor_prob_forward.1} parent=0 // pred_fallthru
    _
  // Predicated region
  $region14: #{meta_actor_prob_forward.1} parent=0 // pred_check
    _
  $region15: #{meta_actor_prob_forward.1} parent=0 // pred_check_branch
    %20 = sbr.rel (0) target = $region17
  $region16: #{meta_actor_prob_forward.1} parent=0 // pred_region
    _
  $region17: #{meta_actor_prob_forward.1} parent=0 // pred_fallthru
    _
  // Predicated region
  $region18: #{meta_actor_prob_forward.1} parent=0 // pred_check
    _
  $region19: #{meta_actor_prob_forward.1} parent=0 // pred_check_branch
    %22 = sbr.rel (0) target = $region21
  $region20: #{meta_actor_prob_forward.1} parent=0 // pred_region
    _
  $region21: #{meta_actor_prob_forward.1} parent=0 // pred_fallthru
    _
  // Predicated region
  $region22: #{meta_actor_prob_forward.1} parent=0 // pred_check
    _
  $region23: #{meta_actor_prob_forward.1} parent=0 // pred_check_branch
    %24 = sbr.rel (0) target = $region25
  $region24: #{meta_actor_prob_forward.1} parent=0 // pred_region
    _
  $region25: #{meta_actor_prob_forward.1} parent=0 // pred_fallthru
    _
  // Predicated region
  $region26: #{meta_actor_prob_forward.1} parent=0 // pred_check
    _
  $region27: #{meta_actor_prob_forward.1} parent=0 // pred_check_branch
    %26 = sbr.rel (0) target = $region29
  $region28: #{meta_actor_prob_forward.1} parent=0 // pred_region
    _
  $region29: #{meta_actor_prob_forward.1} parent=0 // pred_fallthru
    _
  %v27 = vld [vmem:[%s0] sm:$0xff]
  %v28 = vld [vmem:[%s0 + $0x8] sm:$0xff]
  %v29 = vld [vmem:[%s0 + $0x10] sm:$0xff]
  %v30 = vld [vmem:[%s0 + $0x18] sm:$0xff]
  %v31 = vld [vmem:[%s0 + $0x20] sm:$0xff]
  %v32 = vld [vmem:[%s0 + $0x28] sm:$0xff]
  %v33 = vld [vmem:[%s0 + $0x30] sm:$0xff]
  %v34 = vld [vmem:[%s0 + $0x38] sm:$0xff]
  %v35 = vld [vmem:[%s0 + $0x40] sm:$0xff]
  %v36 = vld [vmem:[%s0 + $0x48] sm:$0xff]
  %v37 = vld [vmem:[%s0 + $0x50] sm:$0xff]
  %v38 = vld [vmem:[%s0 + $0x58] sm:$0xff]
  %v39 = vld [vmem:[%s0 + $0x60] sm:$0xff]
  %v40 = vld [vmem:[%s0 + $0x68] sm:$0xff]
  %v41 = vld [vmem:[%s0 + $0x70] sm:$0xff]
  %v42 = vld [vmem:[%s0 + $0x78] sm:$0xff]
  %s43 = smul.u32 0, 128
  %v44 = vlaneseq
  %v45 = vshrl.u32 %v44, 7
  %v46 = vadd.s32 %v45, 8
  %v47 = vadd.s32 %v45, 16
  %v48 = vadd.s32 %v45, 24
  %v49 = vadd.s32 %v45, 32
  %v50 = vadd.s32 %v45, 40
  %v51 = vadd.s32 %v45, 48
  %v52 = vadd.s32 %v45, 56
  %v53 = vadd.s32 %v45, 64
  %v54 = vadd.s32 %v45, 72
  %v55 = vadd.s32 %v45, 80
  %v56 = vadd.s32 %v45, 88
  %v57 = vadd.s32 %v45, 96
  %v58 = vadd.s32 %v45, 104
  %v59 = vadd.s32 %v45, 112
  %v60 = vadd.s32 %v45, 120
  %v61 = vstv %s43
  %v62 = vadd.s32 %v61, %v45
  %v63 = vadd.s32 %v61, %v46
  %v64 = vadd.s32 %v61, %v47
  %v65 = vadd.s32 %v61, %v48
  %v66 = vadd.s32 %v61, %v49
  %v67 = vadd.s32 %v61, %v50
  %v68 = vadd.s32 %v61, %v51
  %v69 = vadd.s32 %v61, %v52
  %v70 = vadd.s32 %v61, %v53
  %v71 = vadd.s32 %v61, %v54
  %v72 = vadd.s32 %v61, %v55
  %v73 = vadd.s32 %v61, %v56
  %v74 = vadd.s32 %v61, %v57
  %v75 = vadd.s32 %v61, %v58
  %v76 = vadd.s32 %v61, %v59
  %v77 = vadd.s32 %v61, %v60
  %vm78 = vcmp.lt.s32.totalorder %v62, 8
  %vm79 = vcmp.lt.s32.totalorder %v63, 8
  %vm80 = vcmp.lt.s32.totalorder %v64, 8
  %vm81 = vcmp.lt.s32.totalorder %v65, 8
  %vm82 = vcmp.lt.s32.totalorder %v66, 8
  %vm83 = vcmp.lt.s32.totalorder %v67, 8
  %vm84 = vcmp.lt.s32.totalorder %v68, 8
  %vm85 = vcmp.lt.s32.totalorder %v69, 8
  %vm86 = vcmp.lt.s32.totalorder %v70, 8
  %vm87 = vcmp.lt.s32.totalorder %v71, 8
  %vm88 = vcmp.lt.s32.totalorder %v72, 8
  %vm89 = vcmp.lt.s32.totalorder %v73, 8
  %vm90 = vcmp.lt.s32.totalorder %v74, 8
  %vm91 = vcmp.lt.s32.totalorder %v75, 8
  %vm92 = vcmp.lt.s32.totalorder %v76, 8
  %vm93 = vcmp.lt.s32.totalorder %v77, 8
  %v94 = vsel %vm78, 1, 0
  %v95 = vsel %vm79, 1, 0
  %v96 = vsel %vm80, 1, 0
  %v97 = vsel %vm81, 1, 0
  %v98 = vsel %vm82, 1, 0
  %v99 = vsel %vm83, 1, 0
  %v100 = vsel %vm84, 1, 0
  %v101 = vsel %vm85, 1, 0
  %v102 = vsel %vm86, 1, 0
  %v103 = vsel %vm87, 1, 0
  %v104 = vsel %vm88, 1, 0
  %v105 = vsel %vm89, 1, 0
  %v106 = vsel %vm90, 1, 0
  %v107 = vsel %vm91, 1, 0
  %v108 = vsel %vm92, 1, 0
  %v109 = vsel %vm93, 1, 0
  %vm110 = vcmp.eq.s32.totalorder %v94, 1
  %vm111 = vcmp.eq.s32.totalorder %v95, 1
  %vm112 = vcmp.eq.s32.totalorder %v96, 1
  %vm113 = vcmp.eq.s32.totalorder %v97, 1
  %vm114 = vcmp.eq.s32.totalorder %v98, 1
  %vm115 = vcmp.eq.s32.totalorder %v99, 1
  %vm116 = vcmp.eq.s32.totalorder %v100, 1
  %vm117 = vcmp.eq.s32.totalorder %v101, 1
  %vm118 = vcmp.eq.s32.totalorder %v102, 1
  %vm119 = vcmp.eq.s32.totalorder %v103, 1
  %vm120 = vcmp.eq.s32.totalorder %v104, 1
  %vm121 = vcmp.eq.s32.totalorder %v105, 1
  %vm122 = vcmp.eq.s32.totalorder %v106, 1
  %vm123 = vcmp.eq.s32.totalorder %v107, 1
  %vm124 = vcmp.eq.s32.totalorder %v108, 1
  %vm125 = vcmp.eq.s32.totalorder %v109, 1
  %v126 = vsel %vm110, %v27, 0.0
  %v127 = vsel %vm111, %v28, 0.0
  %v128 = vsel %vm112, %v29, 0.0
  %v129 = vsel %vm113, %v30, 0.0
  %v130 = vsel %vm114, %v31, 0.0
  %v131 = vsel %vm115, %v32, 0.0
  %v132 = vsel %vm116, %v33, 0.0
  %v133 = vsel %vm117, %v34, 0.0
  %v134 = vsel %vm118, %v35, 0.0
  %v135 = vsel %vm119, %v36, 0.0
  %v136 = vsel %vm120, %v37, 0.0
  %v137 = vsel %vm121, %v38, 0.0
  %v138 = vsel %vm122, %v39, 0.0
  %v139 = vsel %vm123, %v40, 0.0
  %v140 = vsel %vm124, %v41, 0.0
  %v141 = vsel %vm125, %v42, 0.0
  %v142 = vld [vmem:[%s1] sm:$0xff]
  %v143 = vld [vmem:[%s1 + $0x8] sm:$0xff]
  %v144 = vld [vmem:[%s2] sm:$0x1]
  %v146 = vlaneseq
  %v147 = vshrl.u32 %v146, 7
  %v148 = vsub.s32 0, %v147
  %v149 = vrot.slane %v144, %v148
  %vm151 = vcmask 130048
  %v153 = vsel %vm151, %v126, 0
  %v156 = vsel %vm151, %v127, 0
  %v159 = vsel %vm151, %v128, 0
  %v162 = vsel %vm151, %v129, 0
  %v165 = vsel %vm151, %v130, 0
  %v168 = vsel %vm151, %v131, 0
  %v171 = vsel %vm151, %v132, 0
  %v174 = vsel %vm151, %v133, 0
  %v177 = vsel %vm151, %v134, 0
  %v180 = vsel %vm151, %v135, 0
  %v183 = vsel %vm151, %v136, 0
  %v186 = vsel %vm151, %v137, 0
  %v189 = vsel %vm151, %v138, 0
  %v192 = vsel %vm151, %v139, 0
  %v195 = vsel %vm151, %v140, 0
  %v198 = vsel %vm151, %v141, 0
  %200 = vmatprep.subr.mxu0 0.0
  %201 = vmatpush1.msra.mxu0 %v142
  %202 = vmatprep.subr.mxu0 0.0
  %203 = vmatpush1.msra.mxu0 %v143
  %204 = vmatprep.subr.mxu0 0.0
  %205 = vmatpush1.msra.mxu0 0.0
  %206 = vmatprep.subr.mxu0 0.0
  %207 = vmatpush1.msra.mxu0 0.0
  %208 = vmatprep.subr.mxu0 0.0
  %209 = vmatpush1.msra.mxu0 0.0
  %210 = vmatprep.subr.mxu0 0.0
  %211 = vmatpush1.msra.mxu0 0.0
  %212 = vmatprep.subr.mxu0 0.0
  %213 = vmatpush1.msra.mxu0 0.0
  %214 = vmatprep.subr.mxu0 0.0
  %215 = vmatpush1.msra.mxu0 0.0
  %216 = vmatprep.subr.mxu0 0.0
  %217 = vmatpush1.msra.mxu0 0.0
  %218 = vmatprep.subr.mxu0 0.0
  %219 = vmatpush1.msra.mxu0 0.0
  %220 = vmatprep.subr.mxu0 0.0
  %221 = vmatpush1.msra.mxu0 0.0
  %222 = vmatprep.subr.mxu0 0.0
  %223 = vmatpush1.msra.mxu0 0.0
  %224 = vmatprep.subr.mxu0 0.0
  %225 = vmatpush1.msra.mxu0 0.0
  %226 = vmatprep.subr.mxu0 0.0
  %227 = vmatpush1.msra.mxu0 0.0
  %228 = vmatprep.subr.mxu0 0.0
  %229 = vmatpush1.msra.mxu0 0.0
  %230 = vmatprep.subr.mxu0 0.0
  %231 = vmatpush1.msra.mxu0 0.0
  %232 = vmatprep.subr.mxu0 0.0
  %233 = vmatpush1.msra.mxu0 0.0
  %234 = vmatprep.subr.mxu0 0.0
  %235 = vmatpush1.msra.mxu0 0.0
  %236 = vmatprep.subr.mxu0 0.0
  %237 = vmatpush1.msra.mxu0 0.0
  %238 = vmatprep.subr.mxu0 0.0
  %239 = vmatpush1.msra.mxu0 0.0
  %240 = vmatprep.subr.mxu0 0.0
  %241 = vmatpush1.msra.mxu0 0.0
  %242 = vmatprep.subr.mxu0 0.0
  %243 = vmatpush1.msra.mxu0 0.0
  %244 = vmatprep.subr.mxu0 0.0
  %245 = vmatpush1.msra.mxu0 0.0
  %246 = vmatprep.subr.mxu0 0.0
  %247 = vmatpush1.msra.mxu0 0.0
  %248 = vmatprep.subr.mxu0 0.0
  %249 = vmatpush1.msra.mxu0 0.0
  %250 = vmatprep.subr.mxu0 0.0
  %251 = vmatpush1.msra.mxu0 0.0
  %252 = vmatprep.subr.mxu0 0.0
  %253 = vmatpush1.msra.mxu0 0.0
  %254 = vmatprep.subr.mxu0 0.0
  %255 = vmatpush1.msra.mxu0 0.0
  %256 = vmatprep.subr.mxu0 0.0
  %257 = vmatpush1.msra.mxu0 0.0
  %258 = vmatprep.subr.mxu0 0.0
  %259 = vmatpush1.msra.mxu0 0.0
  %260 = vmatprep.subr.mxu0 0.0
  %261 = vmatpush1.msra.mxu0 0.0
  %262 = vmatprep.subr.mxu0 0.0
  %263 = vmatpush1.msra.mxu0 0.0
  %264 = vmatprep.mubr.f32.mxu0 0.0
  %265 = vmatmul.mubr.f32.gmra.mrb[0].mxu0 %v153
  %v266 = vpop.f32.mrb[0].mxu0
  %v267 = vadd.f32 %v149, %v266
  %v268 = vpop.f32.mrb[0].mxu0
  %269 = vmatprep.mubr.f32.mxu0 0.0
  %270 = vmatmul.mubr.f32.gmra.mrb[0].mxu0 %v156
  %v271 = vpop.f32.mrb[0].mxu0
  %v272 = vadd.f32 %v149, %v271
  %v273 = vpop.f32.mrb[0].mxu0
  %274 = vmatprep.mubr.f32.mxu0 0.0
  %275 = vmatmul.mubr.f32.gmra.mrb[0].mxu0 %v159
  %v276 = vpop.f32.mrb[0].mxu0
  %v277 = vadd.f32 %v149, %v276
  %v278 = vpop.f32.mrb[0].mxu0
  %279 = vmatprep.mubr.f32.mxu0 0.0
  %280 = vmatmul.mubr.f32.gmra.mrb[0].mxu0 %v162
  %v281 = vpop.f32.mrb[0].mxu0
  %v282 = vadd.f32 %v149, %v281
  %v283 = vpop.f32.mrb[0].mxu0
  %284 = vmatprep.mubr.f32.mxu0 0.0
  %285 = vmatmul.mubr.f32.gmra.mrb[0].mxu0 %v165
  %v286 = vpop.f32.mrb[0].mxu0
  %v287 = vadd.f32 %v149, %v286
  %v288 = vpop.f32.mrb[0].mxu0
  %289 = vmatprep.mubr.f32.mxu0 0.0
  %290 = vmatmul.mubr.f32.gmra.mrb[0].mxu0 %v168
  %v291 = vpop.f32.mrb[0].mxu0
  %v292 = vadd.f32 %v149, %v291
  %v293 = vpop.f32.mrb[0].mxu0
  %294 = vmatprep.mubr.f32.mxu0 0.0
  %295 = vmatmul.mubr.f32.gmra.mrb[0].mxu0 %v171
  %v296 = vpop.f32.mrb[0].mxu0
  %v297 = vadd.f32 %v149, %v296
  %v298 = vpop.f32.mrb[0].mxu0
  %299 = vmatprep.mubr.f32.mxu0 0.0
  %300 = vmatmul.mubr.f32.gmra.mrb[0].mxu0 %v174
  %v301 = vpop.f32.mrb[0].mxu0
  %v302 = vadd.f32 %v149, %v301
  %v303 = vpop.f32.mrb[0].mxu0
  %304 = vmatprep.mubr.f32.mxu0 0.0
  %305 = vmatmul.mubr.f32.gmra.mrb[0].mxu0 %v177
  %v306 = vpop.f32.mrb[0].mxu0
  %v307 = vadd.f32 %v149, %v306
  %v308 = vpop.f32.mrb[0].mxu0
  %309 = vmatprep.mubr.f32.mxu0 0.0
  %310 = vmatmul.mubr.f32.gmra.mrb[0].mxu0 %v180
  %v311 = vpop.f32.mrb[0].mxu0
  %v312 = vadd.f32 %v149, %v311
  %v313 = vpop.f32.mrb[0].mxu0
  %314 = vmatprep.mubr.f32.mxu0 0.0
  %315 = vmatmul.mubr.f32.gmra.mrb[0].mxu0 %v183
  %v316 = vpop.f32.mrb[0].mxu0
  %v317 = vadd.f32 %v149, %v316
  %v318 = vpop.f32.mrb[0].mxu0
  %319 = vmatprep.mubr.f32.mxu0 0.0
  %320 = vmatmul.mubr.f32.gmra.mrb[0].mxu0 %v186
  %v321 = vpop.f32.mrb[0].mxu0
  %v322 = vadd.f32 %v149, %v321
  %v323 = vpop.f32.mrb[0].mxu0
  %324 = vmatprep.mubr.f32.mxu0 0.0
  %325 = vmatmul.mubr.f32.gmra.mrb[0].mxu0 %v189
  %v326 = vpop.f32.mrb[0].mxu0
  %v327 = vadd.f32 %v149, %v326
  %v328 = vpop.f32.mrb[0].mxu0
  %329 = vmatprep.mubr.f32.mxu0 0.0
  %330 = vmatmul.mubr.f32.gmra.mrb[0].mxu0 %v192
  %v331 = vpop.f32.mrb[0].mxu0
  %v332 = vadd.f32 %v149, %v331
  %v333 = vpop.f32.mrb[0].mxu0
  %334 = vmatprep.mubr.f32.mxu0 0.0
  %335 = vmatmul.mubr.f32.gmra.mrb[0].mxu0 %v195
  %v336 = vpop.f32.mrb[0].mxu0
  %v337 = vadd.f32 %v149, %v336
  %v338 = vpop.f32.mrb[0].mxu0
  %339 = vmatprep.mubr.f32.mxu0 0.0
  %340 = vmatmul.mubr.f32.gmra.mrb[0].mxu0 %v198
  %v341 = vpop.f32.mrb[0].mxu0
  %v342 = vadd.f32 %v149, %v341
  %v343 = vpop.f32.mrb[0].mxu0
  %344 = vdwg.mxu0
  %v345 = vmax.f32 %v267, 0.0
  %v346 = vmax.f32 %v272, 0.0
  %v347 = vmax.f32 %v277, 0.0
  %v348 = vmax.f32 %v282, 0.0
  %v349 = vmax.f32 %v287, 0.0
  %v350 = vmax.f32 %v292, 0.0
  %v351 = vmax.f32 %v297, 0.0
  %v352 = vmax.f32 %v302, 0.0
  %v353 = vmax.f32 %v307, 0.0
  %v354 = vmax.f32 %v312, 0.0
  %v355 = vmax.f32 %v317, 0.0
  %v356 = vmax.f32 %v322, 0.0
  %v357 = vmax.f32 %v327, 0.0
  %v358 = vmax.f32 %v332, 0.0
  %v359 = vmax.f32 %v337, 0.0
  %v360 = vmax.f32 %v342, 0.0
  %v361 = vld [vmem:[%s3] sm:$0xff]
  %v362 = vld [vmem:[%s3 + $0x8] sm:$0xff]
  %v363 = vld [vmem:[%s3 + $0x10] sm:$0xff]
  %v364 = vld [vmem:[%s3 + $0x18] sm:$0xff]
  %v365 = vld [vmem:[%s3 + $0x20] sm:$0xff]
  %v366 = vld [vmem:[%s3 + $0x28] sm:$0xff]
  %v367 = vld [vmem:[%s3 + $0x30] sm:$0xff]
  %v368 = vld [vmem:[%s3 + $0x38] sm:$0xff]
  %v369 = vld [vmem:[%s3 + $0x40] sm:$0xff]
  %v370 = vld [vmem:[%s3 + $0x48] sm:$0xff]
  %v371 = vld [vmem:[%s3 + $0x50] sm:$0xff]
  %v372 = vld [vmem:[%s3 + $0x58] sm:$0xff]
  %v373 = vld [vmem:[%s3 + $0x60] sm:$0xff]
  %v374 = vld [vmem:[%s3 + $0x68] sm:$0xff]
  %v375 = vld [vmem:[%s3 + $0x70] sm:$0xff]
  %v376 = vld [vmem:[%s3 + $0x78] sm:$0xff]
  %v377 = vld [vmem:[%s4] sm:$0x1]
  %v379 = vlaneseq
  %v380 = vshrl.u32 %v379, 7
  %v381 = vsub.s32 0, %v380
  %v382 = vrot.slane %v377, %v381
  %384 = vmatprep.subr.mxu0 0.0
  %385 = vmatpush1.msra.mxu0 %v361
  %386 = vmatprep.subr.mxu0 0.0
  %387 = vmatpush1.msra.mxu0 %v362
  %388 = vmatprep.subr.mxu0 0.0
  %389 = vmatpush1.msra.mxu0 %v363
  %390 = vmatprep.subr.mxu0 0.0
  %391 = vmatpush1.msra.mxu0 %v364
  %392 = vmatprep.subr.mxu0 0.0
  %393 = vmatpush1.msra.mxu0 %v365
  %394 = vmatprep.subr.mxu0 0.0
  %395 = vmatpush1.msra.mxu0 %v366
  %396 = vmatprep.subr.mxu0 0.0
  %397 = vmatpush1.msra.mxu0 %v367
  %398 = vmatprep.subr.mxu0 0.0
  %399 = vmatpush1.msra.mxu0 %v368
  %400 = vmatprep.subr.mxu0 0.0
  %401 = vmatpush1.msra.mxu0 %v369
  %402 = vmatprep.subr.mxu0 0.0
  %403 = vmatpush1.msra.mxu0 %v370
  %404 = vmatprep.subr.mxu0 0.0
  %405 = vmatpush1.msra.mxu0 %v371
  %406 = vmatprep.subr.mxu0 0.0
  %407 = vmatpush1.msra.mxu0 %v372
  %408 = vmatprep.subr.mxu0 0.0
  %409 = vmatpush1.msra.mxu0 %v373
  %410 = vmatprep.subr.mxu0 0.0
  %411 = vmatpush1.msra.mxu0 %v374
  %412 = vmatprep.subr.mxu0 0.0
  %413 = vmatpush1.msra.mxu0 %v375
  %414 = vmatprep.subr.mxu0 0.0
  %415 = vmatpush1.msra.mxu0 %v376
  %416 = vmatprep.subr.mxu0 0.0
  %417 = vmatpush1.msra.mxu0 0.0
  %418 = vmatprep.subr.mxu0 0.0
  %419 = vmatpush1.msra.mxu0 0.0
  %420 = vmatprep.subr.mxu0 0.0
  %421 = vmatpush1.msra.mxu0 0.0
  %422 = vmatprep.subr.mxu0 0.0
  %423 = vmatpush1.msra.mxu0 0.0
  %424 = vmatprep.subr.mxu0 0.0
  %425 = vmatpush1.msra.mxu0 0.0
  %426 = vmatprep.subr.mxu0 0.0
  %427 = vmatpush1.msra.mxu0 0.0
  %428 = vmatprep.subr.mxu0 0.0
  %429 = vmatpush1.msra.mxu0 0.0
  %430 = vmatprep.subr.mxu0 0.0
  %431 = vmatpush1.msra.mxu0 0.0
  %432 = vmatprep.subr.mxu0 0.0
  %433 = vmatpush1.msra.mxu0 0.0
  %434 = vmatprep.subr.mxu0 0.0
  %435 = vmatpush1.msra.mxu0 0.0
  %436 = vmatprep.subr.mxu0 0.0
  %437 = vmatpush1.msra.mxu0 0.0
  %438 = vmatprep.subr.mxu0 0.0
  %439 = vmatpush1.msra.mxu0 0.0
  %440 = vmatprep.subr.mxu0 0.0
  %441 = vmatpush1.msra.mxu0 0.0
  %442 = vmatprep.subr.mxu0 0.0
  %443 = vmatpush1.msra.mxu0 0.0
  %444 = vmatprep.subr.mxu0 0.0
  %445 = vmatpush1.msra.mxu0 0.0
  %446 = vmatprep.subr.mxu0 0.0
  %447 = vmatpush1.msra.mxu0 0.0
  %448 = vmatprep.mubr.f32.mxu0 0.0
  %449 = vmatmul.mubr.f32.gmra.mrb[0].mxu0 %v345
  %v450 = vpop.f32.mrb[0].mxu0
  %v451 = vadd.f32 %v382, %v450
  %v452 = vpop.f32.mrb[0].mxu0
  %453 = vmatprep.mubr.f32.mxu0 0.0
  %454 = vmatmul.mubr.f32.gmra.mrb[0].mxu0 %v346
  %v455 = vpop.f32.mrb[0].mxu0
  %v456 = vadd.f32 %v382, %v455
  %v457 = vpop.f32.mrb[0].mxu0
  %458 = vmatprep.mubr.f32.mxu0 0.0
  %459 = vmatmul.mubr.f32.gmra.mrb[0].mxu0 %v347
  %v460 = vpop.f32.mrb[0].mxu0
  %v461 = vadd.f32 %v382, %v460
  %v462 = vpop.f32.mrb[0].mxu0
  %463 = vmatprep.mubr.f32.mxu0 0.0
  %464 = vmatmul.mubr.f32.gmra.mrb[0].mxu0 %v348
  %v465 = vpop.f32.mrb[0].mxu0
  %v466 = vadd.f32 %v382, %v465
  %v467 = vpop.f32.mrb[0].mxu0
  %468 = vmatprep.mubr.f32.mxu0 0.0
  %469 = vmatmul.mubr.f32.gmra.mrb[0].mxu0 %v349
  %v470 = vpop.f32.mrb[0].mxu0
  %v471 = vadd.f32 %v382, %v470
  %v472 = vpop.f32.mrb[0].mxu0
  %473 = vmatprep.mubr.f32.mxu0 0.0
  %474 = vmatmul.mubr.f32.gmra.mrb[0].mxu0 %v350
  %v475 = vpop.f32.mrb[0].mxu0
  %v476 = vadd.f32 %v382, %v475
  %v477 = vpop.f32.mrb[0].mxu0
  %478 = vmatprep.mubr.f32.mxu0 0.0
  %479 = vmatmul.mubr.f32.gmra.mrb[0].mxu0 %v351
  %v480 = vpop.f32.mrb[0].mxu0
  %v481 = vadd.f32 %v382, %v480
  %v482 = vpop.f32.mrb[0].mxu0
  %483 = vmatprep.mubr.f32.mxu0 0.0
  %484 = vmatmul.mubr.f32.gmra.mrb[0].mxu0 %v352
  %v485 = vpop.f32.mrb[0].mxu0
  %v486 = vadd.f32 %v382, %v485
  %v487 = vpop.f32.mrb[0].mxu0
  %488 = vmatprep.mubr.f32.mxu0 0.0
  %489 = vmatmul.mubr.f32.gmra.mrb[0].mxu0 %v353
  %v490 = vpop.f32.mrb[0].mxu0
  %v491 = vadd.f32 %v382, %v490
  %v492 = vpop.f32.mrb[0].mxu0
  %493 = vmatprep.mubr.f32.mxu0 0.0
  %494 = vmatmul.mubr.f32.gmra.mrb[0].mxu0 %v354
  %v495 = vpop.f32.mrb[0].mxu0
  %v496 = vadd.f32 %v382, %v495
  %v497 = vpop.f32.mrb[0].mxu0
  %498 = vmatprep.mubr.f32.mxu0 0.0
  %499 = vmatmul.mubr.f32.gmra.mrb[0].mxu0 %v355
  %v500 = vpop.f32.mrb[0].mxu0
  %v501 = vadd.f32 %v382, %v500
  %v502 = vpop.f32.mrb[0].mxu0
  %503 = vmatprep.mubr.f32.mxu0 0.0
  %504 = vmatmul.mubr.f32.gmra.mrb[0].mxu0 %v356
  %v505 = vpop.f32.mrb[0].mxu0
  %v506 = vadd.f32 %v382, %v505
  %v507 = vpop.f32.mrb[0].mxu0
  %508 = vmatprep.mubr.f32.mxu0 0.0
  %509 = vmatmul.mubr.f32.gmra.mrb[0].mxu0 %v357
  %v510 = vpop.f32.mrb[0].mxu0
  %v511 = vadd.f32 %v382, %v510
  %v512 = vpop.f32.mrb[0].mxu0
  %513 = vmatprep.mubr.f32.mxu0 0.0
  %514 = vmatmul.mubr.f32.gmra.mrb[0].mxu0 %v358
  %v515 = vpop.f32.mrb[0].mxu0
  %v516 = vadd.f32 %v382, %v515
  %v517 = vpop.f32.mrb[0].mxu0
  %518 = vmatprep.mubr.f32.mxu0 0.0
  %519 = vmatmul.mubr.f32.gmra.mrb[0].mxu0 %v359
  %v520 = vpop.f32.mrb[0].mxu0
  %v521 = vadd.f32 %v382, %v520
  %v522 = vpop.f32.mrb[0].mxu0
  %523 = vmatprep.mubr.f32.mxu0 0.0
  %524 = vmatmul.mubr.f32.gmra.mrb[0].mxu0 %v360
  %v525 = vpop.f32.mrb[0].mxu0
  %v526 = vadd.f32 %v382, %v525
  %v527 = vpop.f32.mrb[0].mxu0
  %528 = vdwg.mxu0
  %v529 = vmax.f32 %v451, 0.0
  %v530 = vmax.f32 %v456, 0.0
  %v531 = vmax.f32 %v461, 0.0
  %v532 = vmax.f32 %v466, 0.0
  %v533 = vmax.f32 %v471, 0.0
  %v534 = vmax.f32 %v476, 0.0
  %v535 = vmax.f32 %v481, 0.0
  %v536 = vmax.f32 %v486, 0.0
  %v537 = vmax.f32 %v491, 0.0
  %v538 = vmax.f32 %v496, 0.0
  %v539 = vmax.f32 %v501, 0.0
  %v540 = vmax.f32 %v506, 0.0
  %v541 = vmax.f32 %v511, 0.0
  %v542 = vmax.f32 %v516, 0.0
  %v543 = vmax.f32 %v521, 0.0
  %v544 = vmax.f32 %v526, 0.0
  %v545 = vld [vmem:[%s5] sm:$0xff]
  %546 = vmatprep.subr.mxu0 0.0
  %547 = vmatpush1.xpose.msra.mxu0 %v529
  %548 = vmatprep.subr.mxu0 0.0
  %549 = vmatpush1.xpose.msra.mxu0 %v530
  %550 = vmatprep.subr.mxu0 0.0
  %551 = vmatpush1.xpose.msra.mxu0 %v531
  %552 = vmatprep.subr.mxu0 0.0
  %553 = vmatpush1.xpose.msra.mxu0 %v532
  %554 = vmatprep.subr.mxu0 0.0
  %555 = vmatpush1.xpose.msra.mxu0 %v533
  %556 = vmatprep.subr.mxu0 0.0
  %557 = vmatpush1.xpose.msra.mxu0 %v534
  %558 = vmatprep.subr.mxu0 0.0
  %559 = vmatpush1.xpose.msra.mxu0 %v535
  %560 = vmatprep.subr.mxu0 0.0
  %561 = vmatpush1.xpose.msra.mxu0 %v536
  %562 = vmatprep.subr.mxu0 0.0
  %563 = vmatpush1.xpose.msra.mxu0 %v537
  %564 = vmatprep.subr.mxu0 0.0
  %565 = vmatpush1.xpose.msra.mxu0 %v538
  %566 = vmatprep.subr.mxu0 0.0
  %567 = vmatpush1.xpose.msra.mxu0 %v539
  %568 = vmatprep.subr.mxu0 0.0
  %569 = vmatpush1.xpose.msra.mxu0 %v540
  %570 = vmatprep.subr.mxu0 0.0
  %571 = vmatpush1.xpose.msra.mxu0 %v541
  %572 = vmatprep.subr.mxu0 0.0
  %573 = vmatpush1.xpose.msra.mxu0 %v542
  %574 = vmatprep.subr.mxu0 0.0
  %575 = vmatpush1.xpose.msra.mxu0 %v543
  %576 = vmatprep.subr.mxu0 0.0
  %577 = vmatpush1.xpose.msra.mxu0 %v544
  %578 = vmatprep.subr.mxu0 0.0
  %579 = vmatpush1.xpose.msra.mxu0 0.0
  %580 = vmatprep.subr.mxu0 0.0
  %581 = vmatpush1.xpose.msra.mxu0 0.0
  %582 = vmatprep.subr.mxu0 0.0
  %583 = vmatpush1.xpose.msra.mxu0 0.0
  %584 = vmatprep.subr.mxu0 0.0
  %585 = vmatpush1.xpose.msra.mxu0 0.0
  %586 = vmatprep.subr.mxu0 0.0
  %587 = vmatpush1.xpose.msra.mxu0 0.0
  %588 = vmatprep.subr.mxu0 0.0
  %589 = vmatpush1.xpose.msra.mxu0 0.0
  %590 = vmatprep.subr.mxu0 0.0
  %591 = vmatpush1.xpose.msra.mxu0 0.0
  %592 = vmatprep.subr.mxu0 0.0
  %593 = vmatpush1.xpose.msra.mxu0 0.0
  %594 = vmatprep.subr.mxu0 0.0
  %595 = vmatpush1.xpose.msra.mxu0 0.0
  %596 = vmatprep.subr.mxu0 0.0
  %597 = vmatpush1.xpose.msra.mxu0 0.0
  %598 = vmatprep.subr.mxu0 0.0
  %599 = vmatpush1.xpose.msra.mxu0 0.0
  %600 = vmatprep.subr.mxu0 0.0
  %601 = vmatpush1.xpose.msra.mxu0 0.0
  %602 = vmatprep.subr.mxu0 0.0
  %603 = vmatpush1.xpose.msra.mxu0 0.0
  %604 = vmatprep.subr.mxu0 0.0
  %605 = vmatpush1.xpose.msra.mxu0 0.0
  %606 = vmatprep.subr.mxu0 0.0
  %607 = vmatpush1.xpose.msra.mxu0 0.0
  %608 = vmatprep.subr.mxu0 0.0
  %609 = vmatpush1.xpose.msra.mxu0 0.0
  %610 = vmatprep.mubr.f32.mxu0 0.0
  %611 = vmatmul.mubr.f32.gmra.mrb[0].mxu0 %v545
  %v612 = vpop.f32.mrb[0].mxu0
  %v613 = vadd.f32 0.0, %v612
  %v614 = vpop.f32.mrb[0].mxu0
  %615 = vdwg.mxu0
  %s616 = sld [smem:[#allocation2]]
  %v617 = vstv %s616
  %v618 = vadd.f32 %v613, %v617
  %v619 = vtanh.pop %v618
  %620 = vst [vmem:[%s7] sm:$0x1] %v619
  // Predicated region
  $region30: #{meta_actor_prob_forward.1} parent=0 // pred_check
    _
  $region31: #{meta_actor_prob_forward.1} parent=0 // pred_check_branch
    %622 = sbr.rel (0) target = $region33
  $region32: #{meta_actor_prob_forward.1} parent=0 // pred_region
    _
  $region33: #{meta_actor_prob_forward.1} parent=0 // pred_fallthru
    _
  // Predicated region
  $region34: #{meta_actor_prob_forward.1} parent=0 // pred_check
    _
  $region35: #{meta_actor_prob_forward.1} parent=0 // pred_check_branch
    %624 = sbr.rel (0) target = $region37
  $region36: #{meta_actor_prob_forward.1} parent=0 // pred_region
    _
  $region37: #{meta_actor_prob_forward.1} parent=0 // pred_fallthru
    _

</llo_original>
